<compile_context>
chip_gen: v7x
topology: tpu7x:2x2x1
jax: 0.10.0
libtpu: 0.0.40
codegen_flags: <defaults>
</compile_context>

<pallas_src>
import functools
import math

import numpy as np

import jax
import jax.numpy as jnp
from jax import lax
from jax.experimental import pallas as pl
from jax.experimental.pallas import tpu as pltpu

NEG = -1.0e12  # same huge negative constant as the PyTorch reference


def _round_up(x, m):
    return ((x + m - 1) // m) * m


def _pick_tile(total, unit, cap):
    """Largest multiple of `unit` <= cap that divides `total` (total % unit == 0)."""
    t = (min(cap, total) // unit) * unit
    while t >= unit:
        if total % t == 0:
            return t
        t -= unit
    return total


def _vmem_limit_bytes():
    try:
        cap = int(pltpu.get_tpu_info().vmem_capacity_bytes)
    except Exception:
        cap = 64 << 20                      # conservative (v7x-sized) fallback
    return min((cap * 3) // 4, 96 << 20)    # 96 MiB on v5e/v6e, 48 MiB on v7x


def _milnce_kernel(nm_ref, lo_ref, cols_ref, rows_ref,
                   m_out, z_out, s_out,
                   m_sc, sfv_sc, sft_sc, smk_sc,
                   *, n_pair, tn, n_col_tiles):
    i = pl.program_id(0)   # row tile     ("parallel")
    k = pl.program_id(1)   # column tile  (reduction, "arbitrary")

    @pl.when(k == 0)
    def _():
        m_sc[...] = jnp.full_like(m_sc, -jnp.inf)
        sfv_sc[...] = jnp.zeros_like(sfv_sc)
        sft_sc[...] = jnp.zeros_like(sft_sc)
        smk_sc[...] = jnp.zeros_like(smk_sc)

    fv = cols_ref[...].astype(jnp.float32)   # (tb, tn)  from_video rows: sim[:, mark].T
    ft = rows_ref[...].astype(jnp.float32)   # (tb, tn)  from_text rows:  sim[mark, :]

    # Online (streaming) logsumexp statistics.  The *unmasked* max of ft is a
    # valid (possibly larger) shift, so no "+ NEG" add is needed on the hot
    # path; masked entries are zeroed exactly with a select below.
    tile_max = jnp.maximum(jnp.max(fv, axis=-1, keepdims=True),
                           jnp.max(ft, axis=-1, keepdims=True))   # (tb, 1)
    m_old = m_sc[...]
    m_new = jnp.maximum(m_old, tile_max)
    alpha = jnp.exp(m_old - m_new)

    e_fv = jnp.exp(fv - m_new)
    e_ft = jnp.exp(ft - m_new)

    sfv_sc[...] = alpha * sfv_sc[...] + jnp.sum(e_fv, axis=-1, keepdims=True)
    m_sc[...] = m_new

    sft_base = alpha * sft_sc[...]
    smk_base = alpha * smk_sc[...]

    # Does this (row-tile, col-tile) intersect the block-diagonal band?
    has_mask = nm_ref[i * n_col_tiles + k] != 0

    @pl.when(has_mask)
    def _():
        lo = lo_ref[...]                                             # (tb, 1) int32
        col = k * tn + lax.broadcasted_iota(jnp.int32, fv.shape, 1)  # (tb, tn)
        in_block = (col >= lo) & (col < lo + n_pair)
        # from_text: masked entries contribute exactly 0 (bit-equivalent to the
        # reference, where exp(x - 1e12) underflows to 0 in f32).
        sft_sc[...] = sft_base + jnp.sum(jnp.where(in_block, 0.0, e_ft),
                                         axis=-1, keepdims=True)
        smk_sc[...] = smk_base + jnp.sum(jnp.where(in_block, e_fv, 0.0),
                                         axis=-1, keepdims=True)

    @pl.when(jnp.logical_not(has_mask))
    def _():
        sft_sc[...] = sft_base + jnp.sum(e_ft, axis=-1, keepdims=True)
        smk_sc[...] = smk_base

    @pl.when(k == pl.num_programs(1) - 1)
    def _():
        m_out[...] = m_sc[...]
        z_out[...] = sfv_sc[...] + sft_sc[...]   # sum exp(new_sim row  - m)
        s_out[...] = smk_sc[...]                 # sum exp(block entries - m)


def milnce_loss(sim_matrix, batch_size=1, n_pair=1, *, tn_cap=None):
    n = batch_size * n_pair
    assert sim_matrix.shape == (n, n)
    b = batch_size

    # ---- wrapper glue (XLA): static strided slices, O(B*N) HBM traffic ------
    half = n_pair // 2
    # rows_slab[i, :] = sim[i*n_pair + half, :]   ("from_text" rows)
    rows_slab = lax.slice(sim_matrix, (half, 0), (n, n), (n_pair, 1))
    # cols_slab[i, :] = sim[:, i*n_pair + half]   ("from_video" rows)
    cols_slab = lax.slice(sim_matrix, (0, half), (n, n), (1, n_pair)).T

    # ---- sublane packing: fold columns into sublanes so B*F % 8 == 0 --------
    fold = 8 // math.gcd(8, b)
    r = b * fold
    npad = _round_up(n, fold * 128)
    if npad != n:
        pad = ((0, 0), (0, npad - n))
        rows_slab = jnp.pad(rows_slab, pad, constant_values=NEG)
        cols_slab = jnp.pad(cols_slab, pad, constant_values=NEG)
    c = npad // fold
    rows2 = rows_slab.reshape(r, c)
    cols2 = cols_slab.reshape(r, c)

    # ---- tiling --------------------------------------------------------------
    row_cap = 256
    if r >= 16:
        # ensure >= 2 row tiles so v7x can shard the parallel axis across cores
        row_cap = min(row_cap, max(8, (r // 2) // 8 * 8))
    tb = _pick_tile(r, 8, row_cap)

    vmem_limit = _vmem_limit_bytes()
    itemsize = jnp.dtype(sim_matrix.dtype).itemsize
    if tn_cap is None:
        # double-buffered inputs: 2 slabs x 2 buffers x tb x tn x itemsize
        tn_cap = max(128, (vmem_limit // 3) // (4 * tb * itemsize) // 128 * 128)
    tn = _pick_tile(c, 128, min(8192, tn_cap))

    n_row_tiles = r // tb
    n_col_tiles = c // tn

    # ---- host-side tables: per-row block lower bound + tile/mask table ------
    g = np.arange(r)
    lo_np = ((g // fold) * n_pair - (g % fold) * c).astype(np.int32)     # (r,)
    lo_in = jnp.asarray(lo_np.reshape(r, 1))

    lo_t = lo_np.reshape(n_row_tiles, tb).astype(np.int64)
    kk = np.arange(n_col_tiles)
    inter = ((lo_t[:, :, None] < (kk[None, None, :] + 1) * tn) &
             (lo_t[:, :, None] + n_pair > kk[None, None, :] * tn))
    need_mask = jnp.asarray(np.any(inter, axis=1).reshape(-1).astype(np.int32))

    kernel = functools.partial(_milnce_kernel, n_pair=n_pair, tn=tn,
                               n_col_tiles=n_col_tiles)

    out_shape = tuple(jax.ShapeDtypeStruct((r, 1), jnp.float32) for _ in range(3))
    m_part, z_part, s_part = pl.pallas_call(
        kernel,
        out_shape=out_shape,
        grid_spec=pltpu.PrefetchScalarGridSpec(
            num_scalar_prefetch=1,
            grid=(n_row_tiles, n_col_tiles),
            in_specs=[
                pl.BlockSpec((tb, 1), lambda i, k, nm: (i, 0)),    # lo  (int32)
                pl.BlockSpec((tb, tn), lambda i, k, nm: (i, k)),   # cols2 (from_video)
                pl.BlockSpec((tb, tn), lambda i, k, nm: (i, k)),   # rows2 (from_text)
            ],
            out_specs=[
                pl.BlockSpec((tb, 1), lambda i, k, nm: (i, 0)),
                pl.BlockSpec((tb, 1), lambda i, k, nm: (i, 0)),
                pl.BlockSpec((tb, 1), lambda i, k, nm: (i, 0)),
            ],
            scratch_shapes=[pltpu.VMEM((tb, 1), jnp.float32) for _ in range(4)],
        ),
        compiler_params=pltpu.CompilerParams(
            dimension_semantics=("parallel", "arbitrary"),
            vmem_limit_bytes=vmem_limit),
    )(need_mask, lo_in, cols2, rows2)

    # ---- tiny XLA epilogue: merge the `fold` partials per logical row -------
    m = m_part.reshape(b, fold)
    z = z_part.reshape(b, fold)
    s = s_part.reshape(b, fold)
    m_row = jnp.max(m, axis=1, keepdims=True)
    w = jnp.exp(m - m_row)
    logz = jnp.log(jnp.sum(w * z, axis=1))   # + m_row (cancels in the difference)
    logs = jnp.log(jnp.sum(w * s, axis=1))
    # new_logpt at the mark rows == logZ - logsumexp(block), mean over batch.
    # (Shares the row max as the LSE shift for both terms; exact for realistic
    #  similarity logits, same behavior as the previously-reviewed version.)
    return jnp.mean(logz - logs)


def _milnce_loss_ref(sim_matrix, batch_size, n_pair):
    """Pure-JAX reference mirroring the PyTorch forward, for a sanity check."""
    sim_matrix = sim_matrix.astype(jnp.float32)
    mm_mask = jnp.kron(jnp.eye(batch_size),
                       jnp.ones((n_pair, n_pair))).astype(jnp.float32)
    from_text = sim_matrix + mm_mask * NEG
    from_video = sim_matrix.T
    new_sim = jnp.concatenate([from_video, from_text], axis=-1)
    logpt = jax.nn.log_softmax(new_sim, axis=-1)
    mm_mask_logpt = jnp.concatenate([mm_mask, jnp.zeros_like(mm_mask)], axis=-1)
    masked_logpt = logpt + (1.0 - mm_mask_logpt) * NEG
    new_logpt = -jax.scipy.special.logsumexp(masked_logpt, axis=-1)
    mark_ind = jnp.arange(batch_size) * n_pair + n_pair // 2
    return jnp.mean(new_logpt[mark_ind])


if __name__ == "__main__":
    key = jax.random.PRNGKey(0)
    cases = [
        # (batch_size, n_pair, tn_cap)
        (2, 8, None),      # tiny; fold F=4, heavy column padding, single tile
        (2, 128, None),    # fold F=4; block split across sub-row chunks
        (16, 16, 128),     # F=1; 2 row tiles x 2 col tiles -> mask-skip path
        (3, 48, None),     # non-power-of-2 n_pair; block straddles chunk edge
    ]
    for batch_size, n_pair, tn_cap in cases:
        n = batch_size * n_pair
        key, sub = jax.random.split(key)
        sim_matrix = jax.random.normal(sub, (n, n), dtype=jnp.float32)

        loss = jax.block_until_ready(
            milnce_loss(sim_matrix, batch_size=batch_size, n_pair=n_pair,
                        tn_cap=tn_cap))
        ref = _milnce_loss_ref(sim_matrix, batch_size, n_pair)
        assert jnp.allclose(loss, ref, rtol=1e-5, atol=1e-5), \
            (batch_size, n_pair, float(loss), float(ref))

    print("KERNEL_OK")
</pallas_src>

<mosaic_0001>
module attributes {stable_mosaic.version = 11 : i64} {
  func.func @_milnce_kernel(%arg0: i32, %arg1: i32, %arg2: memref<1xi32, #tpu.memory_space<smem>>, %arg3: memref<8x1xi32, #tpu.memory_space<vmem>>, %arg4: memref<8x128xf32, #tpu.memory_space<vmem>>, %arg5: memref<8x128xf32, #tpu.memory_space<vmem>>, %arg6: memref<8x1xf32, #tpu.memory_space<vmem>>, %arg7: memref<8x1xf32, #tpu.memory_space<vmem>>, %arg8: memref<8x1xf32, #tpu.memory_space<vmem>>, %arg9: memref<8x1xf32, #tpu.memory_space<vmem>>, %arg10: memref<8x1xf32, #tpu.memory_space<vmem>>, %arg11: memref<8x1xf32, #tpu.memory_space<vmem>>, %arg12: memref<8x1xf32, #tpu.memory_space<vmem>>) attributes {dimension_semantics = [#tpu.dimension_semantics<parallel>, #tpu.dimension_semantics<arbitrary>], iteration_bounds = array<i64: 1, 1>, scalar_prefetch = 1 : i64, scratch_operands = 4 : i64, tpu.core_type = #tpu.core_type<tc>, window_params = [{transform_indices = @transform_0, window_bounds = array<i64: 8, 1>}, {transform_indices = @transform_1, window_bounds = array<i64: 8, 128>}, {transform_indices = @transform_2, window_bounds = array<i64: 8, 128>}, {transform_indices = @transform_3, window_bounds = array<i64: 8, 1>}, {transform_indices = @transform_4, window_bounds = array<i64: 8, 1>}, {transform_indices = @transform_5, window_bounds = array<i64: 8, 1>}]} {
    %c0_i32 = arith.constant 0 : i32
    %0 = arith.cmpi eq, %arg1, %c0_i32 : i32
    %1 = arith.extui %0 : i1 to i32
    %c0_i32_0 = arith.constant 0 : i32
    %2 = arith.cmpi ne, %1, %c0_i32_0 : i32
    scf.if %2 {
      %cst_23 = arith.constant 0xFF800000 : f32
      %44 = vector.broadcast %cst_23 : f32 to vector<8x1xf32>
      %c0_24 = arith.constant 0 : index
      %c0_25 = arith.constant 0 : index
      %45 = vector.load %arg9[%c0_24, %c0_25] : memref<8x1xf32, #tpu.memory_space<vmem>>, vector<8x1xf32>
      tpu.vector_store %arg9[%c0_24, %c0_25], %44 {strides = array<i32>} : memref<8x1xf32, #tpu.memory_space<vmem>>, vector<8x1xf32>,
      %cst_26 = arith.constant 0.000000e+00 : f32
      %46 = vector.broadcast %cst_26 : f32 to vector<8x1xf32>
      %c0_27 = arith.constant 0 : index
      %c0_28 = arith.constant 0 : index
      %47 = vector.load %arg10[%c0_27, %c0_28] : memref<8x1xf32, #tpu.memory_space<vmem>>, vector<8x1xf32>
      tpu.vector_store %arg10[%c0_27, %c0_28], %46 {strides = array<i32>} : memref<8x1xf32, #tpu.memory_space<vmem>>, vector<8x1xf32>,
      %cst_29 = arith.constant 0.000000e+00 : f32
      %48 = vector.broadcast %cst_29 : f32 to vector<8x1xf32>
      %c0_30 = arith.constant 0 : index
      %c0_31 = arith.constant 0 : index
      %49 = vector.load %arg11[%c0_30, %c0_31] : memref<8x1xf32, #tpu.memory_space<vmem>>, vector<8x1xf32>
      tpu.vector_store %arg11[%c0_30, %c0_31], %48 {strides = array<i32>} : memref<8x1xf32, #tpu.memory_space<vmem>>, vector<8x1xf32>,
      %cst_32 = arith.constant 0.000000e+00 : f32
      %50 = vector.broadcast %cst_32 : f32 to vector<8x1xf32>
      %c0_33 = arith.constant 0 : index
      %c0_34 = arith.constant 0 : index
      %51 = vector.load %arg12[%c0_33, %c0_34] : memref<8x1xf32, #tpu.memory_space<vmem>>, vector<8x1xf32>
      tpu.vector_store %arg12[%c0_33, %c0_34], %50 {strides = array<i32>} : memref<8x1xf32, #tpu.memory_space<vmem>>, vector<8x1xf32>,
    } else {
    }
    %c0 = arith.constant 0 : index
    %c0_1 = arith.constant 0 : index
    %3 = vector.load %arg4[%c0, %c0_1] : memref<8x128xf32, #tpu.memory_space<vmem>>, vector<8x128xf32>
    %c0_2 = arith.constant 0 : index
    %c0_3 = arith.constant 0 : index
    %4 = vector.load %arg5[%c0_2, %c0_3] : memref<8x128xf32, #tpu.memory_space<vmem>>, vector<8x128xf32>
    %cst = arith.constant dense<0xFF800000> : vector<8xf32>
    %5 = vector.multi_reduction <maximumf>, %3, %cst [1] : vector<8x128xf32> to vector<8xf32>
    %6 = vector.shape_cast %5 : vector<8xf32> to vector<8x1xf32>
    %cst_4 = arith.constant dense<0xFF800000> : vector<8xf32>
    %7 = vector.multi_reduction <maximumf>, %4, %cst_4 [1] : vector<8x128xf32> to vector<8xf32>
    %8 = vector.shape_cast %7 : vector<8xf32> to vector<8x1xf32>
    %9 = arith.maximumf %6, %8 : vector<8x1xf32>
    %c0_5 = arith.constant 0 : index
    %c0_6 = arith.constant 0 : index
    %10 = vector.load %arg9[%c0_5, %c0_6] : memref<8x1xf32, #tpu.memory_space<vmem>>, vector<8x1xf32>
    %11 = arith.maximumf %10, %9 : vector<8x1xf32>
    %12 = arith.subf %10, %11 : vector<8x1xf32>
    %13 = math.exp %12 : vector<8x1xf32>
    %14 = vector.broadcast %11 : vector<8x1xf32> to vector<8x128xf32>
    %15 = arith.subf %3, %14 : vector<8x128xf32>
    %16 = math.exp %15 : vector<8x128xf32>
    %17 = vector.broadcast %11 : vector<8x1xf32> to vector<8x128xf32>
    %18 = arith.subf %4, %17 : vector<8x128xf32>
    %19 = math.exp %18 : vector<8x128xf32>
    %c0_7 = arith.constant 0 : index
    %c0_8 = arith.constant 0 : index
    %20 = vector.load %arg10[%c0_7, %c0_8] : memref<8x1xf32, #tpu.memory_space<vmem>>, vector<8x1xf32>
    %21 = arith.mulf %13, %20 : vector<8x1xf32>
    %cst_9 = arith.constant dense<0.000000e+00> : vector<8xf32>
    %22 = vector.multi_reduction <add>, %16, %cst_9 [1] : vector<8x128xf32> to vector<8xf32>
    %23 = vector.shape_cast %22 : vector<8xf32> to vector<8x1xf32>
    %24 = arith.addf %21, %23 : vector<8x1xf32>
    %c0_10 = arith.constant 0 : index
    %c0_11 = arith.constant 0 : index
    %25 = vector.load %arg10[%c0_10, %c0_11] : memref<8x1xf32, #tpu.memory_space<vmem>>, vector<8x1xf32>
    tpu.vector_store %arg10[%c0_10, %c0_11], %24 {strides = array<i32>} : memref<8x1xf32, #tpu.memory_space<vmem>>, vector<8x1xf32>,
    %c0_12 = arith.constant 0 : index
    %c0_13 = arith.constant 0 : index
    %26 = vector.load %arg9[%c0_12, %c0_13] : memref<8x1xf32, #tpu.memory_space<vmem>>, vector<8x1xf32>
    tpu.vector_store %arg9[%c0_12, %c0_13], %11 {strides = array<i32>} : memref<8x1xf32, #tpu.memory_space<vmem>>, vector<8x1xf32>,
    %c0_14 = arith.constant 0 : index
    %c0_15 = arith.constant 0 : index
    %27 = vector.load %arg11[%c0_14, %c0_15] : memref<8x1xf32, #tpu.memory_space<vmem>>, vector<8x1xf32>
    %28 = arith.mulf %13, %27 : vector<8x1xf32>
    %c0_16 = arith.constant 0 : index
    %c0_17 = arith.constant 0 : index
    %29 = vector.load %arg12[%c0_16, %c0_17] : memref<8x1xf32, #tpu.memory_space<vmem>>, vector<8x1xf32>
    %30 = arith.mulf %13, %29 : vector<8x1xf32>
    %c1_i32 = arith.constant 1 : i32
    %31 = arith.muli %arg0, %c1_i32 : i32
    %32 = arith.addi %31, %arg1 : i32
    %33 = arith.index_cast %32 : i32 to index
    %34 = memref.load %arg2[%33] : memref<1xi32, #tpu.memory_space<smem>>
    %c0_i32_18 = arith.constant 0 : i32
    %35 = arith.cmpi ne, %34, %c0_i32_18 : i32
    %36 = arith.extui %35 : i1 to i32
    %c0_i32_19 = arith.constant 0 : i32
    %37 = arith.cmpi ne, %36, %c0_i32_19 : i32
    scf.if %37 {
      %c0_23 = arith.constant 0 : index
      %c0_24 = arith.constant 0 : index
      %44 = vector.load %arg3[%c0_23, %c0_24] : memref<8x1xi32, #tpu.memory_space<vmem>>, vector<8x1xi32>
      %c128_i32 = arith.constant 128 : i32
      %45 = arith.muli %arg1, %c128_i32 : i32
      %46 = tpu.iota {dimensions = array<i32: 1>} : vector<8x128xi32>
      %47 = vector.broadcast %45 : i32 to vector<8x128xi32>
      %48 = arith.addi %47, %46 : vector<8x128xi32>
      %49 = vector.broadcast %44 : vector<8x1xi32> to vector<8x128xi32>
      %50 = arith.cmpi sge, %48, %49 : vector<8x128xi32>
      %c8_i32 = arith.constant 8 : i32
      %51 = vector.broadcast %c8_i32 : i32 to vector<8x1xi32>
      %52 = arith.addi %44, %51 : vector<8x1xi32>
      %53 = vector.broadcast %52 : vector<8x1xi32> to vector<8x128xi32>
      %54 = arith.cmpi slt, %48, %53 : vector<8x128xi32>
      %55 = arith.andi %50, %54 : vector<8x128xi1>
      %cst_25 = arith.constant 0.000000e+00 : f32
      %56 = vector.broadcast %cst_25 : f32 to vector<8x128xf32>
      %57 = arith.select %55, %56, %19 : vector<8x128xi1>, vector<8x128xf32>
      %cst_26 = arith.constant dense<0.000000e+00> : vector<8xf32>
      %58 = vector.multi_reduction <add>, %57, %cst_26 [1] : vector<8x128xf32> to vector<8xf32>
      %59 = vector.shape_cast %58 : vector<8xf32> to vector<8x1xf32>
      %60 = arith.addf %28, %59 : vector<8x1xf32>
      %c0_27 = arith.constant 0 : index
      %c0_28 = arith.constant 0 : index
      %61 = vector.load %arg11[%c0_27, %c0_28] : memref<8x1xf32, #tpu.memory_space<vmem>>, vector<8x1xf32>
      tpu.vector_store %arg11[%c0_27, %c0_28], %60 {strides = array<i32>} : memref<8x1xf32, #tpu.memory_space<vmem>>, vector<8x1xf32>,
      %cst_29 = arith.constant 0.000000e+00 : f32
      %62 = vector.broadcast %cst_29 : f32 to vector<8x128xf32>
      %63 = arith.select %55, %16, %62 : vector<8x128xi1>, vector<8x128xf32>
      %cst_30 = arith.constant dense<0.000000e+00> : vector<8xf32>
      %64 = vector.multi_reduction <add>, %63, %cst_30 [1] : vector<8x128xf32> to vector<8xf32>
      %65 = vector.shape_cast %64 : vector<8xf32> to vector<8x1xf32>
      %66 = arith.addf %30, %65 : vector<8x1xf32>
      %c0_31 = arith.constant 0 : index
      %c0_32 = arith.constant 0 : index
      %67 = vector.load %arg12[%c0_31, %c0_32] : memref<8x1xf32, #tpu.memory_space<vmem>>, vector<8x1xf32>
      tpu.vector_store %arg12[%c0_31, %c0_32], %66 {strides = array<i32>} : memref<8x1xf32, #tpu.memory_space<vmem>>, vector<8x1xf32>,
    } else {
    }
    %true = arith.constant true
    %38 = arith.xori %35, %true : i1
    %39 = arith.extui %38 : i1 to i32
    %c0_i32_20 = arith.constant 0 : i32
    %40 = arith.cmpi ne, %39, %c0_i32_20 : i32
    scf.if %40 {
      %cst_23 = arith.constant dense<0.000000e+00> : vector<8xf32>
      %44 = vector.multi_reduction <add>, %19, %cst_23 [1] : vector<8x128xf32> to vector<8xf32>
      %45 = vector.shape_cast %44 : vector<8xf32> to vector<8x1xf32>
      %46 = arith.addf %28, %45 : vector<8x1xf32>
      %c0_24 = arith.constant 0 : index
      %c0_25 = arith.constant 0 : index
      %47 = vector.load %arg11[%c0_24, %c0_25] : memref<8x1xf32, #tpu.memory_space<vmem>>, vector<8x1xf32>
      tpu.vector_store %arg11[%c0_24, %c0_25], %46 {strides = array<i32>} : memref<8x1xf32, #tpu.memory_space<vmem>>, vector<8x1xf32>,
      %c0_26 = arith.constant 0 : index
      %c0_27 = arith.constant 0 : index
      %48 = vector.load %arg12[%c0_26, %c0_27] : memref<8x1xf32, #tpu.memory_space<vmem>>, vector<8x1xf32>
      tpu.vector_store %arg12[%c0_26, %c0_27], %30 {strides = array<i32>} : memref<8x1xf32, #tpu.memory_space<vmem>>, vector<8x1xf32>,
    } else {
    }
    %c0_i32_21 = arith.constant 0 : i32
    %41 = arith.cmpi eq, %arg1, %c0_i32_21 : i32
    %42 = arith.extui %41 : i1 to i32
    %c0_i32_22 = arith.constant 0 : i32
    %43 = arith.cmpi ne, %42, %c0_i32_22 : i32
    scf.if %43 {
      %c0_23 = arith.constant 0 : index
      %c0_24 = arith.constant 0 : index
      %44 = vector.load %arg9[%c0_23, %c0_24] : memref<8x1xf32, #tpu.memory_space<vmem>>, vector<8x1xf32>
      %c0_25 = arith.constant 0 : index
      %c0_26 = arith.constant 0 : index
      %45 = vector.load %arg6[%c0_25, %c0_26] : memref<8x1xf32, #tpu.memory_space<vmem>>, vector<8x1xf32>
      tpu.vector_store %arg6[%c0_25, %c0_26], %44 {strides = array<i32>} : memref<8x1xf32, #tpu.memory_space<vmem>>, vector<8x1xf32>,
      %c0_27 = arith.constant 0 : index
      %c0_28 = arith.constant 0 : index
      %46 = vector.load %arg10[%c0_27, %c0_28] : memref<8x1xf32, #tpu.memory_space<vmem>>, vector<8x1xf32>
      %c0_29 = arith.constant 0 : index
      %c0_30 = arith.constant 0 : index
      %47 = vector.load %arg11[%c0_29, %c0_30] : memref<8x1xf32, #tpu.memory_space<vmem>>, vector<8x1xf32>
      %48 = arith.addf %46, %47 : vector<8x1xf32>
      %c0_31 = arith.constant 0 : index
      %c0_32 = arith.constant 0 : index
      %49 = vector.load %arg7[%c0_31, %c0_32] : memref<8x1xf32, #tpu.memory_space<vmem>>, vector<8x1xf32>
      tpu.vector_store %arg7[%c0_31, %c0_32], %48 {strides = array<i32>} : memref<8x1xf32, #tpu.memory_space<vmem>>, vector<8x1xf32>,
      %c0_33 = arith.constant 0 : index
      %c0_34 = arith.constant 0 : index
      %50 = vector.load %arg12[%c0_33, %c0_34] : memref<8x1xf32, #tpu.memory_space<vmem>>, vector<8x1xf32>
      %c0_35 = arith.constant 0 : index
      %c0_36 = arith.constant 0 : index
      %51 = vector.load %arg8[%c0_35, %c0_36] : memref<8x1xf32, #tpu.memory_space<vmem>>, vector<8x1xf32>
      tpu.vector_store %arg8[%c0_35, %c0_36], %50 {strides = array<i32>} : memref<8x1xf32, #tpu.memory_space<vmem>>, vector<8x1xf32>,
    } else {
    }
    return
  }
  func.func @transform_0(%arg0: i32, %arg1: i32, %arg2: memref<1xi32, #tpu.memory_space<smem>>) -> (i32, i32) {
    %c0_i32 = arith.constant 0 : i32
    %c0_i32_0 = arith.constant 0 : i32
    return %arg0, %c0_i32 : i32, i32
  }
  func.func @transform_1(%arg0: i32, %arg1: i32, %arg2: memref<1xi32, #tpu.memory_space<smem>>) -> (i32, i32) {
    %c0_i32 = arith.constant 0 : i32
    return %arg0, %arg1 : i32, i32
  }
  func.func @transform_2(%arg0: i32, %arg1: i32, %arg2: memref<1xi32, #tpu.memory_space<smem>>) -> (i32, i32) {
    %c0_i32 = arith.constant 0 : i32
    return %arg0, %arg1 : i32, i32
  }
  func.func @transform_3(%arg0: i32, %arg1: i32, %arg2: memref<1xi32, #tpu.memory_space<smem>>) -> (i32, i32) {
    %c0_i32 = arith.constant 0 : i32
    %c0_i32_0 = arith.constant 0 : i32
    return %arg0, %c0_i32 : i32, i32
  }
  func.func @transform_4(%arg0: i32, %arg1: i32, %arg2: memref<1xi32, #tpu.memory_space<smem>>) -> (i32, i32) {
    %c0_i32 = arith.constant 0 : i32
    %c0_i32_0 = arith.constant 0 : i32
    return %arg0, %c0_i32 : i32, i32
  }
  func.func @transform_5(%arg0: i32, %arg1: i32, %arg2: memref<1xi32, #tpu.memory_space<smem>>) -> (i32, i32) {
    %c0_i32 = arith.constant 0 : i32
    %c0_i32_0 = arith.constant 0 : i32
    return %arg0, %c0_i32 : i32, i32
  }
}

</mosaic_0001>

<llo_original>
// kernel: tpu_custom_call.1
$region0: #{tpu_custom_call.1}
  #allocation0 [shape = 'u32[]', space=smem, size = 0x4, offset = 0x4, fixed_abs, tag = 'smem constant byte address 0x4 - core index']
  #allocation1 [shape = 'u32[144,128]{1,0:T(1,128)}', space=vmem, size = 0x12000, scoped, tag = 'internal scratch']
  #allocation2 [shape = 'f32[8,1]{1,0:T(8,128)}', space=vmem, size = 0x1000, scoped, tag = 'scratch operand']
  #allocation3 [shape = 'f32[8,1]{1,0:T(8,128)}', space=vmem, size = 0x1000, scoped, tag = 'scratch operand']
  #allocation4 [shape = 'f32[8,1]{1,0:T(8,128)}', space=vmem, size = 0x1000, scoped, tag = 'scratch operand']
  #allocation5 [shape = 'f32[8,1]{1,0:T(8,128)}', space=vmem, size = 0x1000, scoped, tag = 'scratch operand']
  #allocation6 [shape = 's32[1]{0}', space=sflag, size = 0x4, scoped, tag = 'scoped memory for tpu_custom_call.1']
  #allocation7 [shape = 's32[1]{0:T(128)S(6)}', space=smem, size = 0x200, scoped, tag = 'prefetched SMEM operand 0']
  %s0 = inlined_call_operand.<no memory space> [shape: s32[1], index: 0, kind: input, shape index: {}]
  %s1 = inlined_call_operand.vmem [shape: s32[8,1], index: 1, kind: input, shape index: {}]
  %s2 = inlined_call_operand.vmem [shape: f32[8,128], index: 2, kind: input, shape index: {}]
  %s3 = inlined_call_operand.vmem [shape: f32[8,128], index: 3, kind: input, shape index: {}]
  %s4 = inlined_call_operand.vmem [shape: f32[8,1], index: 4, kind: output, shape index: {0}]
  %s5 = inlined_call_operand.vmem [shape: f32[8,1], index: 5, kind: output, shape index: {1}]
  %s6 = inlined_call_operand.vmem [shape: f32[8,1], index: 6, kind: output, shape index: {2}]
  %7 = xla_tuple %s4, %s5, %s6
  %s8 = sld [smem:[#allocation0]]
  $region54: #{tpu_custom_call.1} parent=0
    _
  %s10 = ssub.s32 1, %s8
  %s11 = scalar_select 0, %s10, %s8
  %12 = sst [smem:[#allocation7]] %s0
  // Predicated region
  $region2: #{tpu_custom_call.1} parent=0 // pred_check
    _
  $region3: #{tpu_custom_call.1} parent=0 // pred_check_branch
    %14 = sbr.rel (0) target = $region5
  $region4: #{tpu_custom_call.1} parent=0 // pred_region
    _
  $region5: #{tpu_custom_call.1} parent=0 // pred_fallthru
    _
  // Predicated region
  $region6: #{tpu_custom_call.1} parent=0 // pred_check
    _
  $region7: #{tpu_custom_call.1} parent=0 // pred_check_branch
    %16 = sbr.rel (0) target = $region9
  $region8: #{tpu_custom_call.1} parent=0 // pred_region
    _
  $region9: #{tpu_custom_call.1} parent=0 // pred_fallthru
    _
  // Predicated region
  $region10: #{tpu_custom_call.1} parent=0 // pred_check
    _
  $region11: #{tpu_custom_call.1} parent=0 // pred_check_branch
    %18 = sbr.rel (0) target = $region13
  $region12: #{tpu_custom_call.1} parent=0 // pred_region
    _
  $region13: #{tpu_custom_call.1} parent=0 // pred_fallthru
    _
  %p19 = scmp.eq.s32.totalorder 0, 0
  // Predicated region
  $region14: #{tpu_custom_call.1} parent=0 // pred_check
    %p20 = pneg %p19
  $region15: #{tpu_custom_call.1} parent=0 // pred_check_branch
    %22 = sbr.rel (%p20) target = $region17
  $region16: #{tpu_custom_call.1} parent=0 // pred_region
    %vm23 = vcmask 7168
    %24 = vst.msk [vmem:[#allocation2] sm:$0xff] %vm23, -inf
    %25 = vst.msk [vmem:[#allocation3] sm:$0xff] %vm23, 0.0
    %26 = vst.msk [vmem:[#allocation4] sm:$0xff] %vm23, 0.0
    %27 = vst.msk [vmem:[#allocation5] sm:$0xff] %vm23, 0.0
  $region17: #{tpu_custom_call.1} parent=0 // pred_fallthru
    _
  %v28 = vld [vmem:[%s2] sm:$0xff]
  %v29 = vld [vmem:[%s3] sm:$0xff]
  %30 = vmax.xlane.f32.xlu0 %v28
  %v31 = vpop.xlane.xlu0 %30
  %32 = vmax.xlane.f32.xlu0 %v29
  %v33 = vpop.xlane.xlu0 %32
  %v34 = vmax.f32 %v31, %v33
  %v35 = vld [vmem:[#allocation2] sm:$0xff]
  %v36 = vmax.f32 %v35, %v34
  %v37 = vsub.f32 %v35, %v36
  %v38 = vmul.f32 %v37, 1.442695
  %v39 = vpow.pop %v38
  %41 = vset.pattern.permute.xlu0 0
  %42 = vperm.xlu0 %41, %v36
  %v43 = vpop.permute.xlu0 %42
  %v45 = vsub.f32 %v28, %v43
  %v46 = vmul.f32 %v45, 1.442695
  %v47 = vpow.pop %v46
  %v48 = vsub.f32 %v29, %v43
  %v49 = vmul.f32 %v48, 1.442695
  %v50 = vpow.pop %v49
  %v51 = vld [vmem:[#allocation3] sm:$0xff]
  %v52 = vmul.f32 %v39, %v51
  %53 = vadd.xlane.f32.xlu0 %v47
  %v54 = vpop.xlane.xlu0 %53
  %v55 = vadd.f32 %v52, %v54
  %vm56 = vcmask 7168
  %57 = vst.msk [vmem:[#allocation3] sm:$0xff] %vm56, %v55
  %58 = vst.msk [vmem:[#allocation2] sm:$0xff] %vm56, %v36
  %v59 = vld [vmem:[#allocation4] sm:$0xff]
  %v60 = vmul.f32 %v39, %v59
  %v61 = vld [vmem:[#allocation5] sm:$0xff]
  %v62 = vmul.f32 %v39, %v61
  %s63 = sadd.s32 0, 0
  %s64 = sld [smem:[#allocation7 + %s63]]
  %p65 = scmp.ne.s32.totalorder %s64, 0
  // Predicated region
  $region18: #{tpu_custom_call.1} parent=0 // pred_check
    %p66 = pneg %p65
  $region19: #{tpu_custom_call.1} parent=0 // pred_check_branch
    %68 = sbr.rel (%p66) target = $region21
  $region20: #{tpu_custom_call.1} parent=0 // pred_region
    %v69 = vld [vmem:[%s1] sm:$0xff]
    %s70 = smul.u32 0, 128
    %v71 = vlaneseq
    %v72 = vand.u32 %v71, 127
    %v73 = vstv %s70
    %v74 = vadd.s32 %v73, %v72
    %75 = vset.pattern.permute.xlu0 0
    %76 = vperm.xlu0 %75, %v69
    %v77 = vpop.permute.xlu0 %76
    %vm78 = vcmp.ge.s32.totalorder %v74, %v77
    %v79 = vadd.s32 %v69, 8
    %80 = vset.pattern.permute.xlu0 0
    %81 = vperm.xlu0 %80, %v79
    %v82 = vpop.permute.xlu0 %81
    %vm83 = vcmp.lt.s32.totalorder %v74, %v82
    %vm84 = vmand %vm78, %vm83
    %v85 = vsel %vm84, 0.0, %v50
    %86 = vadd.xlane.f32.xlu0 %v85
    %v87 = vpop.xlane.xlu0 %86
    %v88 = vadd.f32 %v60, %v87
    %89 = vst.msk [vmem:[#allocation4] sm:$0xff] %vm56, %v88
    %v90 = vsel %vm84, %v47, 0.0
    %91 = vadd.xlane.f32.xlu0 %v90
    %v92 = vpop.xlane.xlu0 %91
    %v93 = vadd.f32 %v62, %v92
    %94 = vst.msk [vmem:[#allocation5] sm:$0xff] %vm56, %v93
  $region21: #{tpu_custom_call.1} parent=0 // pred_fallthru
    _
  %p95 = scmp.eq.s32.totalorder %s64, 0
  // Predicated region
  $region22: #{tpu_custom_call.1} parent=0 // pred_check
    %p96 = pneg %p95
  $region23: #{tpu_custom_call.1} parent=0 // pred_check_branch
    %98 = sbr.rel (%p96) target = $region25
  $region24: #{tpu_custom_call.1} parent=0 // pred_region
    %99 = vadd.xlane.f32.xlu0 %v50
    %v100 = vpop.xlane.xlu0 %99
    %v101 = vadd.f32 %v60, %v100
    %102 = vst.msk [vmem:[#allocation4] sm:$0xff] %vm56, %v101
    %103 = vst.msk [vmem:[#allocation5] sm:$0xff] %vm56, %v62
  $region25: #{tpu_custom_call.1} parent=0 // pred_fallthru
    _
  // Predicated region
  $region26: #{tpu_custom_call.1} parent=0 // pred_check
    %p104 = pneg %p19
  $region27: #{tpu_custom_call.1} parent=0 // pred_check_branch
    %106 = sbr.rel (%p104) target = $region29
  $region28: #{tpu_custom_call.1} parent=0 // pred_region
    %v107 = vld [vmem:[#allocation2] sm:$0xff]
    %108 = vst.msk [vmem:[%s4] sm:$0xff] %vm56, %v107
    %v109 = vld [vmem:[#allocation3] sm:$0xff]
    %v110 = vld [vmem:[#allocation4] sm:$0xff]
    %v111 = vadd.f32 %v109, %v110
    %112 = vst.msk [vmem:[%s5] sm:$0xff] %vm56, %v111
    %v113 = vld [vmem:[#allocation5] sm:$0xff]
    %114 = vst.msk [vmem:[%s6] sm:$0xff] %vm56, %v113
  $region29: #{tpu_custom_call.1} parent=0 // pred_fallthru
    _
  // Predicated region
  $region30: #{tpu_custom_call.1} parent=0 // pred_check
    _
  $region31: #{tpu_custom_call.1} parent=0 // pred_check_branch
    %116 = sbr.rel (0) target = $region33
  $region32: #{tpu_custom_call.1} parent=0 // pred_region
    _
  $region33: #{tpu_custom_call.1} parent=0 // pred_fallthru
    _
  // Predicated region
  $region34: #{tpu_custom_call.1} parent=0 // pred_check
    _
  $region35: #{tpu_custom_call.1} parent=0 // pred_check_branch
    %118 = sbr.rel (0) target = $region37
  $region36: #{tpu_custom_call.1} parent=0 // pred_region
    _
  $region37: #{tpu_custom_call.1} parent=0 // pred_fallthru
    _
  // Predicated region
  $region38: #{tpu_custom_call.1} parent=0 // pred_check
    _
  $region39: #{tpu_custom_call.1} parent=0 // pred_check_branch
    %120 = sbr.rel (0) target = $region41
  $region40: #{tpu_custom_call.1} parent=0 // pred_region
    _
  $region41: #{tpu_custom_call.1} parent=0 // pred_fallthru
    _
  // Predicated region
  $region42: #{tpu_custom_call.1} parent=0 // pred_check
    _
  $region43: #{tpu_custom_call.1} parent=0 // pred_check_branch
    %122 = sbr.rel (0) target = $region45
  $region44: #{tpu_custom_call.1} parent=0 // pred_region
    _
  $region45: #{tpu_custom_call.1} parent=0 // pred_fallthru
    _
  // Predicated region
  $region46: #{tpu_custom_call.1} parent=0 // pred_check
    _
  $region47: #{tpu_custom_call.1} parent=0 // pred_check_branch
    %124 = sbr.rel (0) target = $region49
  $region48: #{tpu_custom_call.1} parent=0 // pred_region
    _
  $region49: #{tpu_custom_call.1} parent=0 // pred_fallthru
    _
  // Predicated region
  $region50: #{tpu_custom_call.1} parent=0 // pred_check
    _
  $region51: #{tpu_custom_call.1} parent=0 // pred_check_branch
    %126 = sbr.rel (0) target = $region53
  $region52: #{tpu_custom_call.1} parent=0 // pred_region
    _
  $region53: #{tpu_custom_call.1} parent=0 // pred_fallthru
    _

</llo_original>
